<compile_context>
chip_gen: v7x
topology: tpu7x:2x2x1
jax: 0.10.0
libtpu: 0.0.40
codegen_flags: <defaults>
</compile_context>

<pallas_src>
import functools

import jax
import jax.numpy as jnp
from jax import lax
from jax.experimental import pallas as pl
from jax.experimental.pallas import tpu as pltpu


# ---------------------------------------------------------------------------
# small helpers
# ---------------------------------------------------------------------------
def _padded_bytes(shape, itemsize=4):
    """VMEM footprint of one block including trailing (8, 128) tile padding."""
    s = [int(d) for d in shape]
    if len(s) == 1:
        s = [1] + s
    s[-2] = -(-s[-2] // 8) * 8
    s[-1] = -(-s[-1] // 128) * 128
    n = 1
    for d in s:
        n *= d
    return n * itemsize


def _vmem_limit(block_shapes, itemsize=4):
    est = sum(_padded_bytes(s, itemsize) for s in block_shapes)
    # x2 for double-buffering + slack; cap documents v7x's 64 MiB physical VMEM per core.
    return int(min(64 * 1024 * 1024, max(16 * 1024 * 1024, 2 * est + (2 << 20))))


def _max_mn_tile():
    # v5e / v6e have 128 MiB VMEM -> allow 1024 tiles; v7x has 64 MiB -> cap at 512.
    try:
        kind = jax.devices()[0].device_kind.lower()
    except Exception:
        return 512
    return 512 if "v7" in kind else 1024


def _pick_tile(dim, cap):
    for c in (1024, 512, 256, 128):
        if c <= cap and dim >= c and dim % c == 0:
            return c
    return dim


# ---------------------------------------------------------------------------
# Kernel 1: tiled linear  y = x @ W^T + b  (used for the hoisted U(e_all) projection)
# ---------------------------------------------------------------------------
def _linear_kernel(x_ref, w_ref, b_ref, o_ref, acc_ref):
    k = pl.program_id(2)

    @pl.when(k == 0)
    def _():
        acc_ref[...] = jnp.zeros_like(acc_ref)

    acc_ref[...] += jnp.dot(x_ref[...], w_ref[...],
                            preferred_element_type=jnp.float32)

    @pl.when(k == pl.num_programs(2) - 1)
    def _():
        o_ref[...] = (acc_ref[...] + b_ref[...]).astype(o_ref.dtype)


def pallas_linear(x2d, w, b):
    """y = x @ W^T + b with W in PyTorch (out, in) layout (transposed once, outside)."""
    M, Din = x2d.shape
    Dout = w.shape[0]
    wt = jnp.transpose(w).astype(jnp.float32)          # (Din, Dout): plain (i,k)x(k,j) in-kernel
    cap = _max_mn_tile()
    tm, tn, tk = _pick_tile(M, cap), _pick_tile(Dout, cap), _pick_tile(Din, 512)
    blocks = [(tm, tk), (tk, tn), (1, tn), (tm, tn), (tm, tn)]
    return pl.pallas_call(
        _linear_kernel,
        out_shape=jax.ShapeDtypeStruct((M, Dout), jnp.float32),
        grid=(M // tm, Dout // tn, Din // tk),
        in_specs=[
            pl.BlockSpec((tm, tk), lambda i, j, k: (i, k)),
            pl.BlockSpec((tk, tn), lambda i, j, k: (k, j)),
            pl.BlockSpec((1, tn), lambda i, j, k: (0, j)),
        ],
        out_specs=pl.BlockSpec((tm, tn), lambda i, j, k: (i, j)),
        scratch_shapes=[pltpu.VMEM((tm, tn), jnp.float32)],
        compiler_params=pltpu.CompilerParams(
            dimension_semantics=("parallel", "parallel", "arbitrary"),
            vmem_limit_bytes=_vmem_limit(blocks)),
    )(x2d.astype(jnp.float32), wt, b.reshape(1, Dout).astype(jnp.float32))


# ---------------------------------------------------------------------------
# Kernel 2: fused recurrent decoder (all T steps of attention + GRU cell + output head)
# ---------------------------------------------------------------------------
def _decoder_kernel(k_ref, u_ref, ww_ref, wb_ref, vblk_ref, exp_ref,
                    wihc_ref, wihi_ref, bih_ref, whh_ref, bhh_ref,
                    lw_ref, lb_ref, h0_ref, tgt_ref,
                    out_ref, attn_ref,
                    *, num_steps, use_target, unroll):
    Bb, L, D = k_ref.shape
    H = vblk_ref.shape[1]

    def mm(a, b):
        return lax.dot_general(a, b, (((1,), (0,)), ((), ())),
                               preferred_element_type=jnp.float32)

    h0 = h0_ref[...].reshape(Bb, D)
    d0 = jnp.zeros((Bb, 3), jnp.float32)

    def step(t, carry):
        h, d_in = carry

        # Query projection of the hidden state: Wq = h @ W^T + b  -> (Bb, D).
        wq = mm(h, ww_ref[...]) + wb_ref[...]

        # Lane-dense additive attention over all heads at once (head h owns lanes
        # [h*Dh, (h+1)*Dh) in the head-transposed layout prepared by the glue).
        th = jnp.tanh(wq[:, None, :] + u_ref[...])                 # (Bb, L, D)
        score = mm(th.reshape(Bb * L, D), vblk_ref[...])           # (Bb*L, H) block-diag V
        score = score.reshape(Bb, L, H)                            # V bias cancels in softmax
        m = jnp.max(score, axis=1, keepdims=True)
        e = jnp.exp(score - m)
        denom = jnp.sum(e, axis=1, keepdims=True)
        dist = e * pl.reciprocal(denom, approx=False)              # (Bb, L, H)

        # One attention-weights store per step (dynamic index on an untiled major dim).
        attn_ref[:, pl.ds(t, 1), :, :] = dist[:, None, :, :]

        # All head contexts at once: expand per-head weights across their Dh lanes,
        # multiply against the (Bb, L, D) keys and reduce over L.
        dist_full = mm(dist.reshape(Bb * L, H), exp_ref[...]).reshape(Bb, L, D)
        ctx = jnp.sum(dist_full * k_ref[...], axis=1)              # (Bb, D)

        # GRU cell, PyTorch gate order (r, z, n); ctx-gate matmul is a single K=D push.
        gx = mm(ctx, wihc_ref[...]) + mm(d_in, wihi_ref[...]) + bih_ref[...]
        gh = mm(h, whh_ref[...]) + bhh_ref[...]
        r = jax.nn.sigmoid(gx[:, :D] + gh[:, :D])
        z = jax.nn.sigmoid(gx[:, D:2 * D] + gh[:, D:2 * D])
        n = jnp.tanh(gx[:, 2 * D:] + r * gh[:, 2 * D:])
        h_new = (1.0 - z) * n + z * h

        # Output head.
        out = mm(h_new, lw_ref[...]) + lb_ref[...]                 # (Bb, 3)
        out_ref[:, pl.ds(t, 1), :, :] = out[:, None, None, :]

        if use_target:                                             # static teacher-forcing flag
            d_next = tgt_ref[:, pl.ds(t, 1), :, :].reshape(Bb, 3)
        else:
            d_next = out
        return (h_new, d_next)

    lax.fori_loop(0, num_steps, step, (h0, d0), unroll=unroll)


# ---------------------------------------------------------------------------
# Full DecoderBlock forward (glue reshapes/transposes are one-time XLA ops)
# ---------------------------------------------------------------------------
def decoder_block_forward(params, e_all, e_last, num_head, longest_coor, target=None):
    f32 = jnp.float32
    B, L, D = e_all.shape
    H = num_head
    assert D % H == 0
    Dh = D // H
    G = 3 * D
    T = int(longest_coor)

    e_all = e_all.astype(f32)

    # Loop-invariant key projection U(e_all): one tiled, software-pipelined Pallas linear.
    u_e = pallas_linear(e_all.reshape(B * L, D), params["U_w"], params["U_b"]).reshape(B, L, D)

    # The reference head split is a *plain reshape* (no transpose).  Re-lay it out so head h
    # owns lanes [h*Dh, (h+1)*Dh) of a lane-dense (B, L, D) tensor the kernel can use directly.
    def head_transpose(x):
        return x.reshape(B, H, L, Dh).transpose(0, 2, 1, 3).reshape(B, L, D)

    u_t = head_transpose(u_e)
    k_t = head_transpose(e_all)

    # Weights pre-transposed once to (in, out); per-head V folded into a block-diagonal matrix
    # and a head->lanes expansion matrix so the kernel never touches Dh-minor data.
    ww_t = jnp.transpose(params["W_w"]).astype(f32)                       # (D, D)
    wb = params["W_b"].reshape(1, D).astype(f32)
    v_block = jnp.kron(jnp.eye(H, dtype=f32),
                       params["V_w"].reshape(Dh, 1).astype(f32))          # (D, H)
    expand_hd = jnp.kron(jnp.eye(H, dtype=f32), jnp.ones((1, Dh), f32))   # (H, D)
    w_ih = params["w_ih"].astype(f32)
    wihc_t = jnp.transpose(w_ih[:, :D])                                   # (D, 3D) ctx part
    wihi_t = jnp.transpose(w_ih[:, D:])                                   # (3, 3D) raw input part
    bih = params["b_ih"].reshape(1, G).astype(f32)
    whh_t = jnp.transpose(params["w_hh"]).astype(f32)                     # (D, 3D)
    bhh = params["b_hh"].reshape(1, G).astype(f32)
    lw_t = jnp.transpose(params["Lin_w"]).astype(f32)                     # (D, 3)
    lb = params["Lin_b"].reshape(1, 3).astype(f32)

    h0 = e_last[0].reshape(B, 1, D).astype(f32)
    if target is None:
        tgt = jnp.zeros((B, T, 1, 3), f32)
        use_target = False
    else:
        tgt = target.astype(f32).reshape(B, T, 1, 3)
        use_target = True

    # Megacore: split the batch across two blocks ("parallel" grid axis) when it divides;
    # v7x's two TensorCores each take half, v5e/v6e just loop over the two blocks.
    nb = 2 if (B % 2 == 0 and B >= 2) else 1
    Bb = B // nb

    in_blocks = [(Bb, L, D), (Bb, L, D), (D, D), (1, D), (D, H), (H, D), (D, G),
                 (3, G), (1, G), (D, G), (1, G), (D, 3), (1, 3), (Bb, 1, D), (Bb, T, 1, 3)]
    out_blocks = [(Bb, T, 1, 3), (Bb, T, L, H)]

    kernel = functools.partial(_decoder_kernel, num_steps=T, use_target=use_target,
                               unroll=True if T <= 16 else 2)

    batch_map3 = lambda b: (b, 0, 0)
    batch_map4 = lambda b: (b, 0, 0, 0)
    const2 = lambda b: (0, 0)

    out4, attn = pl.pallas_call(
        kernel,
        out_shape=(jax.ShapeDtypeStruct((B, T, 1, 3), f32),
                   jax.ShapeDtypeStruct((B, T, L, H), f32)),
        grid=(nb,),
        in_specs=[
            pl.BlockSpec((Bb, L, D), batch_map3),          # keys (head-transposed layout)
            pl.BlockSpec((Bb, L, D), batch_map3),          # U(e_all) (head-transposed layout)
            pl.BlockSpec((D, D), const2),                  # W (in, out)
            pl.BlockSpec((1, D), const2),                  # W bias
            pl.BlockSpec((D, H), const2),                  # block-diagonal V
            pl.BlockSpec((H, D), const2),                  # head -> lanes expansion
            pl.BlockSpec((D, G), const2),                  # w_ih ctx part (in, out)
            pl.BlockSpec((3, G), const2),                  # w_ih raw-input part (in, out)
            pl.BlockSpec((1, G), const2),                  # b_ih
            pl.BlockSpec((D, G), const2),                  # w_hh (in, out)
            pl.BlockSpec((1, G), const2),                  # b_hh
            pl.BlockSpec((D, 3), const2),                  # Linear (in, out)
            pl.BlockSpec((1, 3), const2),                  # Linear bias
            pl.BlockSpec((Bb, 1, D), batch_map3),          # initial hidden state
            pl.BlockSpec((Bb, T, 1, 3), batch_map4),       # teacher-forcing targets
        ],
        out_specs=(
            pl.BlockSpec((Bb, T, 1, 3), batch_map4),       # decoder outputs
            pl.BlockSpec((Bb, T, L, H), batch_map4),       # attention weights
        ),
        compiler_params=pltpu.CompilerParams(
            dimension_semantics=("parallel",),
            vmem_limit_bytes=_vmem_limit(in_blocks + out_blocks)),
    )(k_t, u_t, ww_t, wb, v_block, expand_hd, wihc_t, wihi_t, bih,
      whh_t, bhh, lw_t, lb, h0, tgt)

    d_outputs = out4.reshape(B, T, 3)
    cross_attn = jnp.transpose(attn, (0, 3, 1, 2))         # (B, T, L, H) -> (B, H, T, L)
    return d_outputs, cross_attn


# ---------------------------------------------------------------------------
# Pure-JAX reference (correctness check only; mirrors the PyTorch module exactly)
# ---------------------------------------------------------------------------
def ref_forward(params, e_all, e_last, num_head, longest_coor, target=None):
    B, L, D = e_all.shape
    H = num_head
    Dh = D // H
    u_e = e_all @ params["U_w"].T + params["U_b"]
    u_h = u_e.reshape(B, H, L, Dh)
    k_h = e_all.reshape(B, H, L, Dh)
    h = e_last[0]
    d_in = jnp.zeros((B, 3), jnp.float32)
    outs, dists = [], []
    for t in range(longest_coor):
        wq = h @ params["W_w"].T + params["W_b"]
        wq_h = wq.reshape(B, H, 1, Dh)
        score = jnp.einsum("bhld,od->bhlo", jnp.tanh(wq_h + u_h),
                           params["V_w"])[..., 0] + params["V_b"][0]     # (B, H, L)
        dist = jax.nn.softmax(score, axis=-1)
        ctx = jnp.einsum("bhl,bhld->bhd", dist, k_h).reshape(B, D)
        x = jnp.concatenate([ctx, d_in], axis=-1)
        gx = x @ params["w_ih"].T + params["b_ih"]
        gh = h @ params["w_hh"].T + params["b_hh"]
        r = jax.nn.sigmoid(gx[:, :D] + gh[:, :D])
        z = jax.nn.sigmoid(gx[:, D:2 * D] + gh[:, D:2 * D])
        n = jnp.tanh(gx[:, 2 * D:] + r * gh[:, 2 * D:])
        h = (1.0 - z) * n + z * h
        out = h @ params["Lin_w"].T + params["Lin_b"]
        outs.append(out)
        dists.append(dist)
        d_in = target[:, t, :] if target is not None else out
    d_outputs = jnp.stack(outs, axis=1)       # (B, T, 3)
    cross_attn = jnp.stack(dists, axis=2)     # (B, H, T, L)
    return d_outputs, cross_attn


def init_params(key, dim_model, num_head):
    D = dim_model
    Dh = D // num_head
    G = 3 * D
    keys = jax.random.split(key, 12)

    def u(k, shape, fan_in):
        bound = 1.0 / (fan_in ** 0.5)
        return jax.random.uniform(k, shape, jnp.float32, -bound, bound)

    return {
        "W_w": u(keys[0], (D, D), D), "W_b": u(keys[1], (D,), D),
        "U_w": u(keys[2], (D, D), D), "U_b": u(keys[3], (D,), D),
        "V_w": u(keys[4], (1, Dh), Dh), "V_b": u(keys[5], (1,), Dh),
        "w_ih": u(keys[6], (G, D + 3), D), "b_ih": u(keys[7], (G,), D),
        "w_hh": u(keys[8], (G, D), D), "b_hh": u(keys[9], (G,), D),
        "Lin_w": u(keys[10], (3, D), D), "Lin_b": u(keys[11], (3,), D),
    }


if __name__ == "__main__":
    B, L, dim_model, num_head, longest_coor = 2, 8, 32, 4, 6

    key = jax.random.PRNGKey(0)
    kp, ka, kl, kt = jax.random.split(key, 4)
    params = init_params(kp, dim_model, num_head)

    e_all = jax.random.normal(ka, (B, L, dim_model), jnp.float32)      # encoder states
    e_last = jax.random.normal(kl, (1, B, dim_model), jnp.float32)     # initial GRU hidden
    target = jax.random.normal(kt, (B, longest_coor, 3), jnp.float32)  # teacher-forcing coords

    # Free-running decode (target=None), as in DecoderBlock.forward default.
    out, cross_attn = decoder_block_forward(params, e_all, e_last, num_head, longest_coor)
    out = jax.block_until_ready(out)
    cross_attn = jax.block_until_ready(cross_attn)

    out_ref, attn_ref = ref_forward(params, e_all, e_last, num_head, longest_coor)
    assert out.shape == (B, longest_coor, 3)
    assert cross_attn.shape == (B, num_head, longest_coor, L)
    assert jnp.allclose(out, out_ref, atol=1e-4, rtol=1e-4)
    assert jnp.allclose(cross_attn, attn_ref, atol=1e-4, rtol=1e-4)

    # Teacher-forced decode (target provided).
    out_tf, attn_tf = decoder_block_forward(params, e_all, e_last, num_head,
                                            longest_coor, target=target)
    out_tf = jax.block_until_ready(out_tf)
    out_tf_ref, attn_tf_ref = ref_forward(params, e_all, e_last, num_head,
                                          longest_coor, target=target)
    assert jnp.allclose(out_tf, out_tf_ref, atol=1e-4, rtol=1e-4)
    assert jnp.allclose(attn_tf, attn_tf_ref, atol=1e-4, rtol=1e-4)

    print("KERNEL_OK")
</pallas_src>

<mosaic_0001>
module attributes {stable_mosaic.version = 11 : i64} {
  func.func @_linear_kernel(%arg0: i32, %arg1: i32, %arg2: i32, %arg3: memref<16x32xf32, #tpu.memory_space<vmem>>, %arg4: memref<32x32xf32, #tpu.memory_space<vmem>>, %arg5: memref<1x32xf32, #tpu.memory_space<vmem>>, %arg6: memref<16x32xf32, #tpu.memory_space<vmem>>, %arg7: memref<16x32xf32, #tpu.memory_space<vmem>>) attributes {dimension_semantics = [#tpu.dimension_semantics<parallel>, #tpu.dimension_semantics<parallel>, #tpu.dimension_semantics<arbitrary>], iteration_bounds = array<i64: 1, 1, 1>, scalar_prefetch = 0 : i64, scratch_operands = 1 : i64, tpu.core_type = #tpu.core_type<tc>, window_params = [{transform_indices = @transform_0, window_bounds = array<i64: 16, 32>}, {transform_indices = @transform_1, window_bounds = array<i64: 32, 32>}, {transform_indices = @transform_2, window_bounds = array<i64: 1, 32>}, {transform_indices = @transform_3, window_bounds = array<i64: 16, 32>}]} {
    %c0_i32 = arith.constant 0 : i32
    %0 = arith.cmpi eq, %arg2, %c0_i32 : i32
    %1 = arith.extui %0 : i1 to i32
    %c0_i32_0 = arith.constant 0 : i32
    %2 = arith.cmpi ne, %1, %c0_i32_0 : i32
    scf.if %2 {
      %cst_10 = arith.constant 0.000000e+00 : f32
      %12 = vector.broadcast %cst_10 : f32 to vector<16x32xf32>
      %c0_11 = arith.constant 0 : index
      %c0_12 = arith.constant 0 : index
      %13 = vector.load %arg7[%c0_11, %c0_12] : memref<16x32xf32, #tpu.memory_space<vmem>>, vector<16x32xf32>
      tpu.vector_store %arg7[%c0_11, %c0_12], %12 {strides = array<i32>} : memref<16x32xf32, #tpu.memory_space<vmem>>, vector<16x32xf32>,
    } else {
    }
    %c0 = arith.constant 0 : index
    %c0_1 = arith.constant 0 : index
    %3 = vector.load %arg7[%c0, %c0_1] : memref<16x32xf32, #tpu.memory_space<vmem>>, vector<16x32xf32>
    %c0_2 = arith.constant 0 : index
    %c0_3 = arith.constant 0 : index
    %4 = vector.load %arg3[%c0_2, %c0_3] : memref<16x32xf32, #tpu.memory_space<vmem>>, vector<16x32xf32>
    %c0_4 = arith.constant 0 : index
    %c0_5 = arith.constant 0 : index
    %5 = vector.load %arg4[%c0_4, %c0_5] : memref<32x32xf32, #tpu.memory_space<vmem>>, vector<32x32xf32>
    %cst = arith.constant dense<0.000000e+00> : vector<16x32xf32>
    %6 = tpu.matmul %4, %5, %cst {dimension_numbers = #tpu.dot_dimension_numbers<[1], [0], [0], [1], [0, 0, 1, 1], [], []>} : vector<16x32xf32>, vector<32x32xf32>, vector<16x32xf32> -> vector<16x32xf32>
    %7 = arith.addf %3, %6 : vector<16x32xf32>
    %c0_6 = arith.constant 0 : index
    %c0_7 = arith.constant 0 : index
    %8 = vector.load %arg7[%c0_6, %c0_7] : memref<16x32xf32, #tpu.memory_space<vmem>>, vector<16x32xf32>
    tpu.vector_store %arg7[%c0_6, %c0_7], %7 {strides = array<i32>} : memref<16x32xf32, #tpu.memory_space<vmem>>, vector<16x32xf32>,
    %c0_i32_8 = arith.constant 0 : i32
    %9 = arith.cmpi eq, %arg2, %c0_i32_8 : i32
    %10 = arith.extui %9 : i1 to i32
    %c0_i32_9 = arith.constant 0 : i32
    %11 = arith.cmpi ne, %10, %c0_i32_9 : i32
    scf.if %11 {
      %c0_10 = arith.constant 0 : index
      %c0_11 = arith.constant 0 : index
      %12 = vector.load %arg7[%c0_10, %c0_11] : memref<16x32xf32, #tpu.memory_space<vmem>>, vector<16x32xf32>
      %c0_12 = arith.constant 0 : index
      %c0_13 = arith.constant 0 : index
      %13 = vector.load %arg5[%c0_12, %c0_13] : memref<1x32xf32, #tpu.memory_space<vmem>>, vector<1x32xf32>
      %14 = vector.broadcast %13 : vector<1x32xf32> to vector<16x32xf32>
      %15 = arith.addf %12, %14 : vector<16x32xf32>
      %c0_14 = arith.constant 0 : index
      %c0_15 = arith.constant 0 : index
      %16 = vector.load %arg6[%c0_14, %c0_15] : memref<16x32xf32, #tpu.memory_space<vmem>>, vector<16x32xf32>
      tpu.vector_store %arg6[%c0_14, %c0_15], %15 {strides = array<i32>} : memref<16x32xf32, #tpu.memory_space<vmem>>, vector<16x32xf32>,
    } else {
    }
    return
  }
  func.func @transform_0(%arg0: i32, %arg1: i32, %arg2: i32) -> (i32, i32) {
    %c0_i32 = arith.constant 0 : i32
    return %arg0, %arg2 : i32, i32
  }
  func.func @transform_1(%arg0: i32, %arg1: i32, %arg2: i32) -> (i32, i32) {
    %c0_i32 = arith.constant 0 : i32
    return %arg2, %arg1 : i32, i32
  }
  func.func @transform_2(%arg0: i32, %arg1: i32, %arg2: i32) -> (i32, i32) {
    %c0_i32 = arith.constant 0 : i32
    %c0_i32_0 = arith.constant 0 : i32
    return %c0_i32, %arg1 : i32, i32
  }
  func.func @transform_3(%arg0: i32, %arg1: i32, %arg2: i32) -> (i32, i32) {
    %c0_i32 = arith.constant 0 : i32
    return %arg0, %arg1 : i32, i32
  }
}

</mosaic_0001>

<llo_original>
// kernel: tpu_custom_call.1
$region0: #{tpu_custom_call.1}
  #allocation0 [shape = 'u32[]', space=smem, size = 0x4, offset = 0x4, fixed_abs, tag = 'smem constant byte address 0x4 - core index']
  #allocation1 [shape = 'u32[144,128]{1,0:T(1,128)}', space=vmem, size = 0x12000, scoped, tag = 'internal scratch']
  #allocation2 [shape = 'f32[16,32]{1,0:T(8,128)}', space=vmem, size = 0x2000, scoped, tag = 'scratch operand']
  %s0 = inlined_call_operand.hbm [shape: f32[16,32], index: 0, kind: input, shape index: {}]
  %s1 = inlined_call_operand.hbm [shape: f32[32,32], index: 1, kind: input, shape index: {}]
  %s2 = inlined_call_operand.vmem [shape: f32[1,32], index: 2, kind: input, shape index: {}]
  %s3 = inlined_call_operand.hbm [shape: f32[16,32], index: 3, kind: output, shape index: {}]
  %s4 = sld [smem:[#allocation0]]
  $region38: #{tpu_custom_call.1} parent=0
    _
  %s6 = ssub.s32 1, %s4
  %s7 = scalar_select 0, %s6, %s4
  $region1: #{tpu_custom_call.1} parent=0
    #allocation3 [shape = 'u8[8192]{0}', space=vmem, size = 0x2000, scoped, tag = 'input window, operand 0, single buffered']
    #allocation4 [shape = 's32[1]{0}', space=sflag, size = 0x4, scoped, tag = 'scoped memory for tpu_custom_call.1']
    #allocation5 [shape = 's32[1]{0}', space=sflag, size = 0x4, scoped, tag = 'scoped memory for tpu_custom_call.1']
    #allocation6 [shape = 'u8[16384]{0}', space=vmem, size = 0x4000, scoped, tag = 'input window, operand 1, single buffered']
    #allocation7 [shape = 's32[1]{0}', space=sflag, size = 0x4, scoped, tag = 'scoped memory for tpu_custom_call.1']
    #allocation8 [shape = 'u8[8192]{0}', space=vmem, size = 0x2000, scoped, tag = 'output window, operand 0, single buffered']
    %8 = vsyncpa [#allocation4], 0
    %9 = vsyncpa [#allocation7], 0
    %10 = vsyncpa [#allocation5], 0
    // Predicated region
    $region2: #{tpu_custom_call.1} parent=1 // pred_check
      _
    $region3: #{tpu_custom_call.1} parent=1 // pred_check_branch
      %12 = sbr.rel (0) target = $region5
    $region4: #{tpu_custom_call.1} parent=1 // pred_region
      %s14 = ssub.s32 256, 256
      %15 = vsyncadd [#allocation4], %s14
      %s16 = sshll.u32 [#allocation3], 4
      %s17 = int_to_ptr.vmem [resolvable:$true] %s16
      %22 = dma.hbm_to_vmem [thread:$0]  %s0, 256, %s17, [#allocation4], 128, 128, 8
    $region5: #{tpu_custom_call.1} parent=1 // pred_fallthru
      _
    // Predicated region
    $region6: #{tpu_custom_call.1} parent=1 // pred_check
      _
    $region7: #{tpu_custom_call.1} parent=1 // pred_check_branch
      %24 = sbr.rel (0) target = $region9
    $region8: #{tpu_custom_call.1} parent=1 // pred_region
      %s26 = ssub.s32 512, 512
      %27 = vsyncadd [#allocation7], %s26
      %s28 = sshll.u32 [#allocation6], 4
      %s29 = int_to_ptr.vmem [resolvable:$true] %s28
      %34 = dma.hbm_to_vmem [thread:$0]  %s1, 512, %s29, [#allocation7], 128, 128, 8
    $region9: #{tpu_custom_call.1} parent=1 // pred_fallthru
      _
    // Predicated region
    $region10: #{tpu_custom_call.1} parent=1 // pred_check
      _
    $region11: #{tpu_custom_call.1} parent=1 // pred_check_branch
      %36 = sbr.rel (0) target = $region13
    $region12: #{tpu_custom_call.1} parent=1 // pred_region
      _
    $region13: #{tpu_custom_call.1} parent=1 // pred_fallthru
      _
    // Predicated region
    $region14: #{tpu_custom_call.1} parent=1 // pred_check
      _
    $region15: #{tpu_custom_call.1} parent=1 // pred_check_branch
      %38 = sbr.rel (0) target = $region17
    $region16: #{tpu_custom_call.1} parent=1 // pred_region
      %39 = dma.done [#allocation4], 256
    $region17: #{tpu_custom_call.1} parent=1 // pred_fallthru
      _
    // Predicated region
    $region18: #{tpu_custom_call.1} parent=1 // pred_check
      _
    $region19: #{tpu_custom_call.1} parent=1 // pred_check_branch
      %41 = sbr.rel (0) target = $region21
    $region20: #{tpu_custom_call.1} parent=1 // pred_region
      %42 = dma.done [#allocation7], 512
    $region21: #{tpu_custom_call.1} parent=1 // pred_fallthru
      _
    %p43 = scmp.eq.s32.totalorder 0, 0
    // Predicated region
    $region22: #{tpu_custom_call.1} parent=1 // pred_check
      %p44 = pneg %p43
    $region23: #{tpu_custom_call.1} parent=1 // pred_check_branch
      %46 = sbr.rel (%p44) target = $region25
    $region24: #{tpu_custom_call.1} parent=1 // pred_region
      %vm47 = vcmask 261120
      %48 = vst.msk [vmem:[#allocation2] sm:$0xff] %vm47, 0.0
      %49 = vst.msk [vmem:[#allocation2 + $0x8] sm:$0xff] %vm47, 0.0
    $region25: #{tpu_custom_call.1} parent=1 // pred_fallthru
      _
    %v50 = vld [vmem:[#allocation2] sm:$0xff]
    %v51 = vld [vmem:[#allocation2 + $0x8] sm:$0xff]
    %v52 = vld [vmem:[#allocation3] sm:$0xff]
    %v53 = vld [vmem:[#allocation3 + $0x8] sm:$0xff]
    %v54 = vld [vmem:[#allocation6] sm:$0xff]
    %v55 = vld [vmem:[#allocation6 + $0x8] sm:$0xff]
    %v56 = vld [vmem:[#allocation6 + $0x10] sm:$0xff]
    %v57 = vld [vmem:[#allocation6 + $0x18] sm:$0xff]
    %vm58 = vcmask 261120
    %v60 = vsel %vm58, %v52, 0
    %v63 = vsel %vm58, %v53, 0
    %65 = vmatprep.subr.mxu0 0.0
    %66 = vmatpush1.msra.mxu0 %v54
    %67 = vmatprep.subr.mxu0 0.0
    %68 = vmatpush1.msra.mxu0 %v55
    %69 = vmatprep.subr.mxu0 0.0
    %70 = vmatpush1.msra.mxu0 %v56
    %71 = vmatprep.subr.mxu0 0.0
    %72 = vmatpush1.msra.mxu0 %v57
    %73 = vmatprep.subr.mxu0 0.0
    %74 = vmatpush1.msra.mxu0 0.0
    %75 = vmatprep.subr.mxu0 0.0
    %76 = vmatpush1.msra.mxu0 0.0
    %77 = vmatprep.subr.mxu0 0.0
    %78 = vmatpush1.msra.mxu0 0.0
    %79 = vmatprep.subr.mxu0 0.0
    %80 = vmatpush1.msra.mxu0 0.0
    %81 = vmatprep.subr.mxu0 0.0
    %82 = vmatpush1.msra.mxu0 0.0
    %83 = vmatprep.subr.mxu0 0.0
    %84 = vmatpush1.msra.mxu0 0.0
    %85 = vmatprep.subr.mxu0 0.0
    %86 = vmatpush1.msra.mxu0 0.0
    %87 = vmatprep.subr.mxu0 0.0
    %88 = vmatpush1.msra.mxu0 0.0
    %89 = vmatprep.subr.mxu0 0.0
    %90 = vmatpush1.msra.mxu0 0.0
    %91 = vmatprep.subr.mxu0 0.0
    %92 = vmatpush1.msra.mxu0 0.0
    %93 = vmatprep.subr.mxu0 0.0
    %94 = vmatpush1.msra.mxu0 0.0
    %95 = vmatprep.subr.mxu0 0.0
    %96 = vmatpush1.msra.mxu0 0.0
    %97 = vmatprep.subr.mxu0 0.0
    %98 = vmatpush1.msra.mxu0 0.0
    %99 = vmatprep.subr.mxu0 0.0
    %100 = vmatpush1.msra.mxu0 0.0
    %101 = vmatprep.subr.mxu0 0.0
    %102 = vmatpush1.msra.mxu0 0.0
    %103 = vmatprep.subr.mxu0 0.0
    %104 = vmatpush1.msra.mxu0 0.0
    %105 = vmatprep.subr.mxu0 0.0
    %106 = vmatpush1.msra.mxu0 0.0
    %107 = vmatprep.subr.mxu0 0.0
    %108 = vmatpush1.msra.mxu0 0.0
    %109 = vmatprep.subr.mxu0 0.0
    %110 = vmatpush1.msra.mxu0 0.0
    %111 = vmatprep.subr.mxu0 0.0
    %112 = vmatpush1.msra.mxu0 0.0
    %113 = vmatprep.subr.mxu0 0.0
    %114 = vmatpush1.msra.mxu0 0.0
    %115 = vmatprep.subr.mxu0 0.0
    %116 = vmatpush1.msra.mxu0 0.0
    %117 = vmatprep.subr.mxu0 0.0
    %118 = vmatpush1.msra.mxu0 0.0
    %119 = vmatprep.subr.mxu0 0.0
    %120 = vmatpush1.msra.mxu0 0.0
    %121 = vmatprep.subr.mxu0 0.0
    %122 = vmatpush1.msra.mxu0 0.0
    %123 = vmatprep.subr.mxu0 0.0
    %124 = vmatpush1.msra.mxu0 0.0
    %125 = vmatprep.subr.mxu0 0.0
    %126 = vmatpush1.msra.mxu0 0.0
    %127 = vmatprep.subr.mxu0 0.0
    %128 = vmatpush1.msra.mxu0 0.0
    %129 = vmatprep.mubr.f32.mxu0 0.0
    %130 = vmatmul.mubr.f32.gmra.mrb[0].mxu0 %v60
    %v131 = vpop.f32.mrb[0].mxu0
    %v132 = vadd.f32 0.0, %v131
    %v133 = vpop.f32.mrb[0].mxu0
    %134 = vmatprep.mubr.f32.mxu0 0.0
    %135 = vmatmul.mubr.f32.gmra.mrb[0].mxu0 %v63
    %v136 = vpop.f32.mrb[0].mxu0
    %v137 = vadd.f32 0.0, %v136
    %v138 = vpop.f32.mrb[0].mxu0
    %139 = vdwg.mxu0
    %v140 = vadd.f32 %v50, %v132
    %v141 = vadd.f32 %v51, %v137
    %142 = vst.msk [vmem:[#allocation2] sm:$0xff] %vm58, %v140
    %143 = vst.msk [vmem:[#allocation2 + $0x8] sm:$0xff] %vm58, %v141
    // Predicated region
    $region26: #{tpu_custom_call.1} parent=1 // pred_check
      %p144 = pneg %p43
    $region27: #{tpu_custom_call.1} parent=1 // pred_check_branch
      %146 = sbr.rel (%p144) target = $region29
    $region28: #{tpu_custom_call.1} parent=1 // pred_region
      %v147 = vld [vmem:[#allocation2] sm:$0xff]
      %v148 = vld [vmem:[#allocation2 + $0x8] sm:$0xff]
      %v149 = vld [vmem:[%s2] sm:$0x1]
      %v151 = vlaneseq
      %v152 = vshrl.u32 %v151, 7
      %v153 = vsub.s32 0, %v152
      %v154 = vrot.slane %v149, %v153
      %v156 = vadd.f32 %v147, %v154
      %v157 = vadd.f32 %v148, %v154
      %158 = vst.msk [vmem:[#allocation8] sm:$0xff] %vm58, %v156
      %159 = vst.msk [vmem:[#allocation8 + $0x8] sm:$0xff] %vm58, %v157
    $region29: #{tpu_custom_call.1} parent=1 // pred_fallthru
      _
    // Predicated region
    $region30: #{tpu_custom_call.1} parent=1 // pred_check
      _
    $region31: #{tpu_custom_call.1} parent=1 // pred_check_branch
      %161 = sbr.rel (0) target = $region33
    $region32: #{tpu_custom_call.1} parent=1 // pred_region
      %s163 = ssub.s32 256, 256
      %164 = vsyncadd [#allocation5], %s163
      %s165 = sshll.u32 [#allocation8], 4
      %s166 = int_to_ptr.vmem [resolvable:$true] %s165
      %171 = dma.vmem_to_hbm [thread:$0]  %s166, 256, %s3, [#allocation5], 128, 128, 8
    $region33: #{tpu_custom_call.1} parent=1 // pred_fallthru
      _
    // Predicated region
    $region34: #{tpu_custom_call.1} parent=1 // pred_check
      _
    $region35: #{tpu_custom_call.1} parent=1 // pred_check_branch
      %173 = sbr.rel (0) target = $region37
    $region36: #{tpu_custom_call.1} parent=1 // pred_region
      %174 = dma.done [#allocation5], 256
    $region37: #{tpu_custom_call.1} parent=1 // pred_fallthru
      _
    %175 = vsyncpa [#allocation4], 1
    %176 = vsyncpa [#allocation7], 1
    %177 = vsyncpa [#allocation5], 1

</llo_original>
